<compile_context>
chip_gen: v6e
topology: v6e:2x2x1
jax: 0.10.0
libtpu: 0.0.40
codegen_flags: <defaults>
</compile_context>

<pallas_src>
import jax
import jax.numpy as jnp
from jax.experimental import pallas as pl
from jax.experimental.pallas import tpu as pltpu

HIDDEN1 = 64
HIDDEN2 = 32
LANE = 128          # TPU lane width: hidden compute widths padded to this
SUBLANE = 8         # sublane granularity for the batch tile


def _round_up(n, m):
    return ((n + m - 1) // m) * m


def _pad2d(a, rows, cols):
    r, c = a.shape
    return jnp.pad(a, ((0, rows - r), (0, cols - c)))


def knapsack_kernel(x_ref, w1_ref, b1_ref, w2_ref, b2_ref, w3_ref, b3_ref,
                    o_ref):
    d_out = o_ref.shape[-1]

    # bf16 MXU inputs (no-op cast if the caller already supplies bf16 x, which
    # also halves the x DMA bytes); f32 accumulate + f32 element-wise epilogues.
    x = x_ref[...].astype(jnp.bfloat16)                          # (TB, D_in)

    # Layer 1: Linear -> ReLU   (128-lane padded hidden; zero cols propagate)
    h1 = jnp.dot(x, w1_ref[...], preferred_element_type=jnp.float32)
    h1 = jnp.maximum(h1 + b1_ref[...], 0.0)                      # (TB, 128) f32

    # Layer 2: Linear -> ReLU
    h2 = jnp.dot(h1.astype(jnp.bfloat16), w2_ref[...],
                 preferred_element_type=jnp.float32)
    h2 = jnp.maximum(h2 + b2_ref[...], 0.0)                      # (TB, 128) f32

    # Layer 3: Linear -> Sigmoid. Compute 128-lane wide, store only the true
    # output columns (padded columns never reach HBM).
    h3 = jnp.dot(h2.astype(jnp.bfloat16), w3_ref[...],
                 preferred_element_type=jnp.float32)
    h3 = h3 + b3_ref[...]                                        # (TB, 128) f32
    o_ref[...] = jax.nn.sigmoid(h3)[:, :d_out].astype(o_ref.dtype)


def _batch_dim_semantics(num_tiles, core_parallel):
    """CORE_PARALLEL gives a true 2-TensorCore split of batch tiles on v7x;
    single-TC v5e/v6e use plain "parallel" (≈ "arbitrary" in measurements)."""
    if core_parallel is None:
        try:
            kind = jax.devices()[0].device_kind.lower()
        except Exception:
            kind = ""
        core_parallel = ("v7" in kind) and num_tiles >= 2
    return (pltpu.CORE_PARALLEL,) if core_parallel else ("parallel",)


def knapsack_net_forward(x, params, *, tile_b=2048, core_parallel=None):
    """Forward pass of KnapsackNet.

    x: (batch, input_size) f32 (or bf16).  params: dict of (in, out)-layout
    weights w1/w2/w3 and (1, out) biases b1/b2/b3.  Returns (batch, d_out) f32.
    """
    w1, b1, w2, b2, w3, b3 = (params["w1"], params["b1"], params["w2"],
                              params["b2"], params["w3"], params["b3"])
    batch, d_in = x.shape
    d_out = w3.shape[1]

    # ---- compute widths padded to 128 lanes; weights -> bf16 for the MXU,
    #      biases stay f32 (added after the f32 accumulation). ---------------
    h1p = _round_up(HIDDEN1, LANE)
    h2p = _round_up(HIDDEN2, LANE)
    d3p = _round_up(d_out, LANE)      # in-kernel width only; HBM output = d_out

    w1p = _pad2d(w1.astype(jnp.bfloat16), d_in, h1p)
    b1p = _pad2d(b1.astype(jnp.float32), 1, h1p)
    w2p = _pad2d(w2.astype(jnp.bfloat16), h1p, h2p)
    b2p = _pad2d(b2.astype(jnp.float32), 1, h2p)
    w3p = _pad2d(w3.astype(jnp.bfloat16), h2p, d3p)
    b3p = _pad2d(b3.astype(jnp.float32), 1, d3p)

    # ---- batch tiling: no host-side pad / slice. A single full-extent block
    #      when batch <= tile_b (always legal); otherwise 8-aligned tiles with
    #      the ragged last tile masked by Pallas. ----------------------------
    tile_b = int(tile_b)
    if tile_b >= batch:
        tile_b = batch
    else:
        tile_b = max(SUBLANE, (tile_b // SUBLANE) * SUBLANE)
    num_tiles = pl.cdiv(batch, tile_b)
    grid = (num_tiles,)

    def resident(a):
        # Constant index map -> block stays VMEM-resident across the grid.
        # TODO(synk): pipeline_mode=pl.Buffered(1) would drop the pointless
        # double-buffer of these ~150 KiB weights; skipped (negligible win).
        return pl.BlockSpec(a.shape, lambda i: (0, 0))

    out = pl.pallas_call(
        knapsack_kernel,
        out_shape=jax.ShapeDtypeStruct((batch, d_out), jnp.float32),
        grid=grid,
        in_specs=[
            pl.BlockSpec((tile_b, d_in), lambda i: (i, 0)),   # streamed x tile
            resident(w1p), resident(b1p),
            resident(w2p), resident(b2p),
            resident(w3p), resident(b3p),
        ],
        # True-width output block: last dim equals the full array dim (legal),
        # avoiding padded HBM writes and any post-kernel slice pass.
        out_specs=pl.BlockSpec((tile_b, d_out), lambda i: (i, 0)),
        compiler_params=pltpu.CompilerParams(
            dimension_semantics=_batch_dim_semantics(num_tiles, core_parallel)),
    )(x, w1p, b1p, w2p, b2p, w3p, b3p)

    return out


def init_params(key, input_size, output_size):
    """Deterministic init mirroring nn.Linear shapes (stored as (in, out))."""
    k1, k2, k3, k4, k5, k6 = jax.random.split(key, 6)

    def lin(kw, kb, fan_in, fan_out):
        bound = 1.0 / jnp.sqrt(fan_in)
        w = jax.random.uniform(kw, (fan_in, fan_out), jnp.float32,
                               minval=-bound, maxval=bound)
        b = jax.random.uniform(kb, (1, fan_out), jnp.float32,
                               minval=-bound, maxval=bound)
        return w, b

    w1, b1 = lin(k1, k2, input_size, HIDDEN1)
    w2, b2 = lin(k3, k4, HIDDEN1, HIDDEN2)
    w3, b3 = lin(k5, k6, HIDDEN2, output_size)
    return {"w1": w1, "b1": b1, "w2": w2, "b2": b2, "w3": w3, "b3": b3}


def reference_forward(x, p):
    h1 = jnp.maximum(x @ p["w1"] + p["b1"], 0.0)
    h2 = jnp.maximum(h1 @ p["w2"] + p["b2"], 0.0)
    return jax.nn.sigmoid(h2 @ p["w3"] + p["b3"])


if __name__ == "__main__":
    key = jax.random.PRNGKey(0)
    kx, kp = jax.random.split(key)

    # Small shapes; batch=20 with tile_b=8 exercises the multi-step grid AND
    # the ragged (masked) last tile of the cdiv-based batch tiling.
    batch, input_size, output_size = 20, 16, 4
    x = jax.random.normal(kx, (batch, input_size), jnp.float32)
    params = init_params(kp, input_size, output_size)

    out = knapsack_net_forward(x, params, tile_b=8)
    out = jax.block_until_ready(out)

    ref = reference_forward(x, params)
    assert out.shape == (batch, output_size)
    # bf16 MXU inputs vs f32 reference -> loose tolerance.
    assert jnp.allclose(out, ref, atol=2e-2, rtol=2e-2), float(
        jnp.max(jnp.abs(out - ref)))

    print("KERNEL_OK")
</pallas_src>

<mosaic_0001>
module attributes {stable_mosaic.version = 11 : i64} {
  func.func @knapsack_kernel(%arg0: i32, %arg1: memref<8x16xf32, #tpu.memory_space<vmem>>, %arg2: memref<16x128xbf16, #tpu.memory_space<vmem>>, %arg3: memref<1x128xf32, #tpu.memory_space<vmem>>, %arg4: memref<128x128xbf16, #tpu.memory_space<vmem>>, %arg5: memref<1x128xf32, #tpu.memory_space<vmem>>, %arg6: memref<128x128xbf16, #tpu.memory_space<vmem>>, %arg7: memref<1x128xf32, #tpu.memory_space<vmem>>, %arg8: memref<8x4xf32, #tpu.memory_space<vmem>>) attributes {dimension_semantics = [#tpu.dimension_semantics<parallel>], iteration_bounds = array<i64: 3>, scalar_prefetch = 0 : i64, scratch_operands = 0 : i64, tpu.core_type = #tpu.core_type<tc>, window_params = [{transform_indices = @transform_0, window_bounds = array<i64: 8, 16>}, {pipeline_mode = #tpu.pipeline_mode<synchronous>, transform_indices = @transform_1, window_bounds = array<i64: 16, 128>}, {pipeline_mode = #tpu.pipeline_mode<synchronous>, transform_indices = @transform_2, window_bounds = array<i64: 1, 128>}, {pipeline_mode = #tpu.pipeline_mode<synchronous>, transform_indices = @transform_3, window_bounds = array<i64: 128, 128>}, {pipeline_mode = #tpu.pipeline_mode<synchronous>, transform_indices = @transform_4, window_bounds = array<i64: 1, 128>}, {pipeline_mode = #tpu.pipeline_mode<synchronous>, transform_indices = @transform_5, window_bounds = array<i64: 128, 128>}, {pipeline_mode = #tpu.pipeline_mode<synchronous>, transform_indices = @transform_6, window_bounds = array<i64: 1, 128>}, {transform_indices = @transform_7, window_bounds = array<i64: 8, 4>}]} {
    %c0 = arith.constant 0 : index
    %c0_0 = arith.constant 0 : index
    %0 = vector.load %arg1[%c0, %c0_0] : memref<8x16xf32, #tpu.memory_space<vmem>>, vector<8x16xf32>
    %1 = arith.truncf %0 : vector<8x16xf32> to vector<8x16xbf16>
    %c0_1 = arith.constant 0 : index
    %c0_2 = arith.constant 0 : index
    %2 = vector.load %arg2[%c0_1, %c0_2] : memref<16x128xbf16, #tpu.memory_space<vmem>>, vector<16x128xbf16>
    %cst = arith.constant dense<0.000000e+00> : vector<8x128xf32>
    %3 = tpu.matmul %1, %2, %cst {dimension_numbers = #tpu.dot_dimension_numbers<[1], [0], [0], [1], [0, 0, 1, 1], [], []>} : vector<8x16xbf16>, vector<16x128xbf16>, vector<8x128xf32> -> vector<8x128xf32>
    %c0_3 = arith.constant 0 : index
    %c0_4 = arith.constant 0 : index
    %4 = vector.load %arg3[%c0_3, %c0_4] : memref<1x128xf32, #tpu.memory_space<vmem>>, vector<1x128xf32>
    %5 = vector.broadcast %4 : vector<1x128xf32> to vector<8x128xf32>
    %6 = arith.addf %3, %5 : vector<8x128xf32>
    %cst_5 = arith.constant 0.000000e+00 : f32
    %7 = vector.broadcast %cst_5 : f32 to vector<8x128xf32>
    %8 = arith.maximumf %6, %7 : vector<8x128xf32>
    %9 = arith.truncf %8 : vector<8x128xf32> to vector<8x128xbf16>
    %c0_6 = arith.constant 0 : index
    %c0_7 = arith.constant 0 : index
    %10 = vector.load %arg4[%c0_6, %c0_7] : memref<128x128xbf16, #tpu.memory_space<vmem>>, vector<128x128xbf16>
    %cst_8 = arith.constant dense<0.000000e+00> : vector<8x128xf32>
    %11 = tpu.matmul %9, %10, %cst_8 {dimension_numbers = #tpu.dot_dimension_numbers<[1], [0], [0], [1], [0, 0, 1, 1], [], []>} : vector<8x128xbf16>, vector<128x128xbf16>, vector<8x128xf32> -> vector<8x128xf32>
    %c0_9 = arith.constant 0 : index
    %c0_10 = arith.constant 0 : index
    %12 = vector.load %arg5[%c0_9, %c0_10] : memref<1x128xf32, #tpu.memory_space<vmem>>, vector<1x128xf32>
    %13 = vector.broadcast %12 : vector<1x128xf32> to vector<8x128xf32>
    %14 = arith.addf %11, %13 : vector<8x128xf32>
    %cst_11 = arith.constant 0.000000e+00 : f32
    %15 = vector.broadcast %cst_11 : f32 to vector<8x128xf32>
    %16 = arith.maximumf %14, %15 : vector<8x128xf32>
    %17 = arith.truncf %16 : vector<8x128xf32> to vector<8x128xbf16>
    %c0_12 = arith.constant 0 : index
    %c0_13 = arith.constant 0 : index
    %18 = vector.load %arg6[%c0_12, %c0_13] : memref<128x128xbf16, #tpu.memory_space<vmem>>, vector<128x128xbf16>
    %cst_14 = arith.constant dense<0.000000e+00> : vector<8x128xf32>
    %19 = tpu.matmul %17, %18, %cst_14 {dimension_numbers = #tpu.dot_dimension_numbers<[1], [0], [0], [1], [0, 0, 1, 1], [], []>} : vector<8x128xbf16>, vector<128x128xbf16>, vector<8x128xf32> -> vector<8x128xf32>
    %c0_15 = arith.constant 0 : index
    %c0_16 = arith.constant 0 : index
    %20 = vector.load %arg7[%c0_15, %c0_16] : memref<1x128xf32, #tpu.memory_space<vmem>>, vector<1x128xf32>
    %21 = vector.broadcast %20 : vector<1x128xf32> to vector<8x128xf32>
    %22 = arith.addf %19, %21 : vector<8x128xf32>
    %23 = arith.negf %22 : vector<8x128xf32>
    %24 = math.exp %23 : vector<8x128xf32>
    %cst_17 = arith.constant 1.000000e+00 : f32
    %25 = vector.broadcast %cst_17 : f32 to vector<8x128xf32>
    %26 = arith.addf %25, %24 : vector<8x128xf32>
    %27 = arith.divf %25, %26 : vector<8x128xf32>
    %28 = vector.extract_strided_slice %27 {offsets = [0, 0], sizes = [8, 4], strides = [1, 1]} : vector<8x128xf32> to vector<8x4xf32>
    %c0_18 = arith.constant 0 : index
    %c0_19 = arith.constant 0 : index
    %29 = vector.load %arg8[%c0_18, %c0_19] : memref<8x4xf32, #tpu.memory_space<vmem>>, vector<8x4xf32>
    tpu.vector_store %arg8[%c0_18, %c0_19], %28 {strides = array<i32>} : memref<8x4xf32, #tpu.memory_space<vmem>>, vector<8x4xf32>,
    return
  }
  func.func @transform_0(%arg0: i32) -> (i32, i32) {
    %c0_i32 = arith.constant 0 : i32
    %c0_i32_0 = arith.constant 0 : i32
    return %arg0, %c0_i32 : i32, i32
  }
  func.func @transform_1(%arg0: i32) -> (i32, i32) {
    %c0_i32 = arith.constant 0 : i32
    %c0_i32_0 = arith.constant 0 : i32
    %c0_i32_1 = arith.constant 0 : i32
    return %c0_i32, %c0_i32_0 : i32, i32
  }
  func.func @transform_2(%arg0: i32) -> (i32, i32) {
    %c0_i32 = arith.constant 0 : i32
    %c0_i32_0 = arith.constant 0 : i32
    %c0_i32_1 = arith.constant 0 : i32
    return %c0_i32, %c0_i32_0 : i32, i32
  }
  func.func @transform_3(%arg0: i32) -> (i32, i32) {
    %c0_i32 = arith.constant 0 : i32
    %c0_i32_0 = arith.constant 0 : i32
    %c0_i32_1 = arith.constant 0 : i32
    return %c0_i32, %c0_i32_0 : i32, i32
  }
  func.func @transform_4(%arg0: i32) -> (i32, i32) {
    %c0_i32 = arith.constant 0 : i32
    %c0_i32_0 = arith.constant 0 : i32
    %c0_i32_1 = arith.constant 0 : i32
    return %c0_i32, %c0_i32_0 : i32, i32
  }
  func.func @transform_5(%arg0: i32) -> (i32, i32) {
    %c0_i32 = arith.constant 0 : i32
    %c0_i32_0 = arith.constant 0 : i32
    %c0_i32_1 = arith.constant 0 : i32
    return %c0_i32, %c0_i32_0 : i32, i32
  }
  func.func @transform_6(%arg0: i32) -> (i32, i32) {
    %c0_i32 = arith.constant 0 : i32
    %c0_i32_0 = arith.constant 0 : i32
    %c0_i32_1 = arith.constant 0 : i32
    return %c0_i32, %c0_i32_0 : i32, i32
  }
  func.func @transform_7(%arg0: i32) -> (i32, i32) {
    %c0_i32 = arith.constant 0 : i32
    %c0_i32_0 = arith.constant 0 : i32
    return %arg0, %c0_i32 : i32, i32
  }
}

</mosaic_0001>

<llo_original>
// kernel: tpu_custom_call.1
$region0: #{tpu_custom_call.1}
  #allocation0 [shape = 'u32[]', space=smem, size = 0x4, offset = 0x4, fixed_abs, tag = 'smem constant byte address 0x4 - core index']
  #allocation1 [shape = 'u32[144,128]{1,0:T(1,128)}', space=vmem, size = 0x12000, scoped, tag = 'internal scratch']
  %s0 = inlined_call_operand.vmem [shape: f32[20,16], index: 0, kind: input, shape index: {}]
  %s1 = inlined_call_operand.vmem [shape: bf16[16,128], index: 1, kind: input, shape index: {}]
  %s2 = inlined_call_operand.vmem [shape: f32[1,128], index: 2, kind: input, shape index: {}]
  %s3 = inlined_call_operand.hbm [shape: bf16[128,128], index: 3, kind: input, shape index: {}]
  %s4 = inlined_call_operand.vmem [shape: f32[1,128], index: 4, kind: input, shape index: {}]
  %s5 = inlined_call_operand.hbm [shape: bf16[128,128], index: 5, kind: input, shape index: {}]
  %s6 = inlined_call_operand.vmem [shape: f32[1,128], index: 6, kind: input, shape index: {}]
  %s7 = inlined_call_operand.vmem [shape: f32[20,4], index: 7, kind: output, shape index: {}]
  %s8 = sld [smem:[#allocation0]]
  $region69: #{tpu_custom_call.1} parent=0
    _
  %s10 = ssub.s32 1, %s8
  %s11 = scalar_select 0, %s10, %s8
  $region1: #{tpu_custom_call.1} parent=0
    #allocation2 [shape = 'u8[32768]{0}', space=vmem, size = 0x8000, scoped, tag = 'input window, operand 3, single buffered']
    #allocation3 [shape = 's32[2]{0}', space=sflag, size = 0x8, scoped, tag = 'scoped memory for tpu_custom_call.1']
    #allocation4 [shape = 'u8[32768]{0}', space=vmem, size = 0x8000, scoped, tag = 'input window, operand 5, single buffered']
    #allocation5 [shape = 's32[1]{0}', space=sflag, size = 0x4, scoped, tag = 'scoped memory for tpu_custom_call.1']
    %12 = vsyncpa [#allocation3], 0
    %13 = vsyncpa [#allocation5], 0
    loop: start=0, step=1, limit=5
    $region2: #{tpu_custom_call.1} parent=1 // loop_pre_header
      _
    $region3: #{tpu_custom_call.1} parent=1 // loop_header
      %s15 = sphi 0, %s19
      %p16 = scmp.ge.s32.totalorder %s15, 5
      %s25 = sphi 0, %s27
      %s28 = sphi 0, %s25
      %s29 = sphi 0, %s28
      %s45 = sphi 0, %s29
      %s49 = sphi 0, %s49
      %s51 = sphi 0, %s49
      %s52 = sphi 0, %s51
      %s66 = sphi 0, %s52
      %s70 = sphi 0, %s70
      %s72 = sphi 0, %s70
      %s73 = sphi 0, %s72
      %s87 = sphi 0, %s73
      %s91 = sphi 0, %s91
      %s93 = sphi 0, %s91
      %s94 = sphi 0, %s93
      %s108 = sphi 0, %s94
      %s112 = sphi 0, %s112
      %s114 = sphi 0, %s112
      %s115 = sphi 0, %s114
      %s129 = sphi 0, %s115
      %s133 = sphi 0, %s133
      %s135 = sphi 0, %s133
      %s136 = sphi 0, %s135
      %s150 = sphi 0, %s136
      %s154 = sphi 0, %s154
      %s156 = sphi 0, %s154
      %s157 = sphi 0, %s156
      %s171 = sphi 0, %s157
      %s177 = sphi 0, %s179
      %s180 = sphi 0, %s177
      %s181 = sphi 0, %s180
      %s197 = sphi 0, %s181
    $region4: #{tpu_custom_call.1} parent=1 // loop_header_branch
      %18 = sbr.rel (%p16) target = $region8
    $region5: #{tpu_custom_call.1} parent=1 // loop_body
      %s20 = ssub.s32 %s15, 1
      %s21 = ssub.s32 %s15, 2
      %s22 = sadd.s32 %s15, 1
      %s23 = ssub.s32 %s15, %s22
      %p24 = scmp.eq.s32.totalorder %s23, 0
      %s26 = sadd.s32 %s25, 1
      %s27 = scalar_select %p24, %s25, %s26
      %p30 = pneg %p24
      %p31 = scmp.eq.s32.totalorder %s15, 2
      %p32 = por %p30, %p31
      %p33 = scmp.ne.s32.totalorder %s25, %s28
      %p34 = scmp.eq.s32.totalorder %s15, 0
      %p35 = por %p33, %p34
      %p36 = scmp.ne.s32.totalorder %s25, %s28
      %p37 = scmp.eq.s32.totalorder %s20, 2
      %p38 = por %p36, %p37
      %p39 = scmp.ne.s32.totalorder %s28, %s29
      %p40 = scmp.eq.s32.totalorder %s20, 0
      %p41 = por %p39, %p40
      %p42 = scmp.ne.s32.totalorder %s28, %s29
      %p43 = scmp.eq.s32.totalorder %s21, 2
      %p44 = por %p42, %p43
      %p46 = scmp.ne.s32.totalorder %s29, %s45
      %p47 = scmp.eq.s32.totalorder %s21, 0
      %p48 = por %p46, %p47
      %s50 = sadd.s32 %s49, 1
      %p53 = scmp.eq.s32.totalorder %s15, 2
      %p54 = scmp.ne.s32.totalorder %s49, %s51
      %p55 = scmp.eq.s32.totalorder %s15, 0
      %p56 = por %p54, %p55
      %p57 = scmp.ne.s32.totalorder %s49, %s51
      %p58 = scmp.eq.s32.totalorder %s20, 2
      %p59 = por %p57, %p58
      %p60 = scmp.ne.s32.totalorder %s51, %s52
      %p61 = scmp.eq.s32.totalorder %s20, 0
      %p62 = por %p60, %p61
      %p63 = scmp.ne.s32.totalorder %s51, %s52
      %p64 = scmp.eq.s32.totalorder %s21, 2
      %p65 = por %p63, %p64
      %p67 = scmp.ne.s32.totalorder %s52, %s66
      %p68 = scmp.eq.s32.totalorder %s21, 0
      %p69 = por %p67, %p68
      %s71 = sadd.s32 %s70, 1
      %p74 = scmp.eq.s32.totalorder %s15, 2
      %p75 = scmp.ne.s32.totalorder %s70, %s72
      %p76 = scmp.eq.s32.totalorder %s15, 0
      %p77 = por %p75, %p76
      %p78 = scmp.ne.s32.totalorder %s70, %s72
      %p79 = scmp.eq.s32.totalorder %s20, 2
      %p80 = por %p78, %p79
      %p81 = scmp.ne.s32.totalorder %s72, %s73
      %p82 = scmp.eq.s32.totalorder %s20, 0
      %p83 = por %p81, %p82
      %p84 = scmp.ne.s32.totalorder %s72, %s73
      %p85 = scmp.eq.s32.totalorder %s21, 2
      %p86 = por %p84, %p85
      %p88 = scmp.ne.s32.totalorder %s73, %s87
      %p89 = scmp.eq.s32.totalorder %s21, 0
      %p90 = por %p88, %p89
      %s92 = sadd.s32 %s91, 1
      %p95 = scmp.eq.s32.totalorder %s15, 2
      %p96 = scmp.ne.s32.totalorder %s91, %s93
      %p97 = scmp.eq.s32.totalorder %s15, 0
      %p98 = por %p96, %p97
      %p99 = scmp.ne.s32.totalorder %s91, %s93
      %p100 = scmp.eq.s32.totalorder %s20, 2
      %p101 = por %p99, %p100
      %p102 = scmp.ne.s32.totalorder %s93, %s94
      %p103 = scmp.eq.s32.totalorder %s20, 0
      %p104 = por %p102, %p103
      %p105 = scmp.ne.s32.totalorder %s93, %s94
      %p106 = scmp.eq.s32.totalorder %s21, 2
      %p107 = por %p105, %p106
      %p109 = scmp.ne.s32.totalorder %s94, %s108
      %p110 = scmp.eq.s32.totalorder %s21, 0
      %p111 = por %p109, %p110
      %s113 = sadd.s32 %s112, 1
      %p116 = scmp.eq.s32.totalorder %s15, 2
      %p117 = scmp.ne.s32.totalorder %s112, %s114
      %p118 = scmp.eq.s32.totalorder %s15, 0
      %p119 = por %p117, %p118
      %p120 = scmp.ne.s32.totalorder %s112, %s114
      %p121 = scmp.eq.s32.totalorder %s20, 2
      %p122 = por %p120, %p121
      %p123 = scmp.ne.s32.totalorder %s114, %s115
      %p124 = scmp.eq.s32.totalorder %s20, 0
      %p125 = por %p123, %p124
      %p126 = scmp.ne.s32.totalorder %s114, %s115
      %p127 = scmp.eq.s32.totalorder %s21, 2
      %p128 = por %p126, %p127
      %p130 = scmp.ne.s32.totalorder %s115, %s129
      %p131 = scmp.eq.s32.totalorder %s21, 0
      %p132 = por %p130, %p131
      %s134 = sadd.s32 %s133, 1
      %p137 = scmp.eq.s32.totalorder %s15, 2
      %p138 = scmp.ne.s32.totalorder %s133, %s135
      %p139 = scmp.eq.s32.totalorder %s15, 0
      %p140 = por %p138, %p139
      %p141 = scmp.ne.s32.totalorder %s133, %s135
      %p142 = scmp.eq.s32.totalorder %s20, 2
      %p143 = por %p141, %p142
      %p144 = scmp.ne.s32.totalorder %s135, %s136
      %p145 = scmp.eq.s32.totalorder %s20, 0
      %p146 = por %p144, %p145
      %p147 = scmp.ne.s32.totalorder %s135, %s136
      %p148 = scmp.eq.s32.totalorder %s21, 2
      %p149 = por %p147, %p148
      %p151 = scmp.ne.s32.totalorder %s136, %s150
      %p152 = scmp.eq.s32.totalorder %s21, 0
      %p153 = por %p151, %p152
      %s155 = sadd.s32 %s154, 1
      %p158 = scmp.eq.s32.totalorder %s15, 2
      %p159 = scmp.ne.s32.totalorder %s154, %s156
      %p160 = scmp.eq.s32.totalorder %s15, 0
      %p161 = por %p159, %p160
      %p162 = scmp.ne.s32.totalorder %s154, %s156
      %p163 = scmp.eq.s32.totalorder %s20, 2
      %p164 = por %p162, %p163
      %p165 = scmp.ne.s32.totalorder %s156, %s157
      %p166 = scmp.eq.s32.totalorder %s20, 0
      %p167 = por %p165, %p166
      %p168 = scmp.ne.s32.totalorder %s156, %s157
      %p169 = scmp.eq.s32.totalorder %s21, 2
      %p170 = por %p168, %p169
      %p172 = scmp.ne.s32.totalorder %s157, %s171
      %p173 = scmp.eq.s32.totalorder %s21, 0
      %p174 = por %p172, %p173
      %s175 = ssub.s32 %s15, %s22
      %p176 = scmp.eq.s32.totalorder %s175, 0
      %s178 = sadd.s32 %s177, 1
      %s179 = scalar_select %p176, %s177, %s178
      %p182 = pneg %p176
      %p183 = scmp.eq.s32.totalorder %s15, 2
      %p184 = por %p182, %p183
      %p185 = scmp.ne.s32.totalorder %s177, %s180
      %p186 = scmp.eq.s32.totalorder %s15, 0
      %p187 = por %p185, %p186
      %p188 = scmp.ne.s32.totalorder %s177, %s180
      %p189 = scmp.eq.s32.totalorder %s20, 2
      %p190 = por %p188, %p189
      %p191 = scmp.ne.s32.totalorder %s180, %s181
      %p192 = scmp.eq.s32.totalorder %s20, 0
      %p193 = por %p191, %p192
      %p194 = scmp.ne.s32.totalorder %s180, %s181
      %p195 = scmp.eq.s32.totalorder %s21, 2
      %p196 = por %p194, %p195
      %p198 = scmp.ne.s32.totalorder %s181, %s197
      %p199 = scmp.eq.s32.totalorder %s21, 0
      %p200 = por %p198, %p199
      %p201 = scmp.le.s32.totalorder 1, %s15
      %p202 = scmp.lt.s32.totalorder %s15, 4
      %p203 = pnand %p201, %p202
      %p204 = pneg %p203
      // Predicated region
      $region9: #{tpu_custom_call.1} parent=5 // pred_check
        _
      $region10: #{tpu_custom_call.1} parent=5 // pred_check_branch
        %206 = sbr.rel (%p203) target = $region12
      $region11: #{tpu_custom_call.1} parent=5 // pred_region
        %s207 = ssub.s32 %s15, 1
        // Predicated region
        $region13: #{tpu_custom_call.1} parent=11 // pred_check
          %p208 = pneg %p62
        $region14: #{tpu_custom_call.1} parent=11 // pred_check_branch
          %210 = sbr.rel (%p208) target = $region16
        $region15: #{tpu_custom_call.1} parent=11 // pred_region
          _
        $region16: #{tpu_custom_call.1} parent=11 // pred_fallthru
          _
        // Predicated region
        $region17: #{tpu_custom_call.1} parent=11 // pred_check
          %p211 = pneg %p83
        $region18: #{tpu_custom_call.1} parent=11 // pred_check_branch
          %213 = sbr.rel (%p211) target = $region20
        $region19: #{tpu_custom_call.1} parent=11 // pred_region
          _
        $region20: #{tpu_custom_call.1} parent=11 // pred_fallthru
          _
        // Predicated region
        $region21: #{tpu_custom_call.1} parent=11 // pred_check
          %p214 = pneg %p104
        $region22: #{tpu_custom_call.1} parent=11 // pred_check_branch
          %216 = sbr.rel (%p214) target = $region24
        $region23: #{tpu_custom_call.1} parent=11 // pred_region
          %s218 = ssub.s32 1024, 1024
          %219 = vsyncadd [#allocation3], %s218
          %s220 = sshll.u32 [#allocation2], 4
          %s221 = int_to_ptr.vmem [resolvable:$true] %s220
          %226 = dma.hbm_to_vmem [thread:$0]  %s3, 1024, %s221, [#allocation3], 64, 64, 4
        $region24: #{tpu_custom_call.1} parent=11 // pred_fallthru
          _
        // Predicated region
        $region25: #{tpu_custom_call.1} parent=11 // pred_check
          %p227 = pneg %p125
        $region26: #{tpu_custom_call.1} parent=11 // pred_check_branch
          %229 = sbr.rel (%p227) target = $region28
        $region27: #{tpu_custom_call.1} parent=11 // pred_region
          _
        $region28: #{tpu_custom_call.1} parent=11 // pred_fallthru
          _
        // Predicated region
        $region29: #{tpu_custom_call.1} parent=11 // pred_check
          %p230 = pneg %p146
        $region30: #{tpu_custom_call.1} parent=11 // pred_check_branch
          %232 = sbr.rel (%p230) target = $region32
        $region31: #{tpu_custom_call.1} parent=11 // pred_region
          %s234 = ssub.s32 1024, 1024
          %235 = vsyncadd [#allocation5], %s234
          %s236 = sshll.u32 [#allocation4], 4
          %s237 = int_to_ptr.vmem [resolvable:$true] %s236
          %242 = dma.hbm_to_vmem [thread:$0]  %s5, 1024, %s237, [#allocation5], 64, 64, 4
        $region32: #{tpu_custom_call.1} parent=11 // pred_fallthru
          _
        // Predicated region
        $region33: #{tpu_custom_call.1} parent=11 // pred_check
          %p243 = pneg %p167
        $region34: #{tpu_custom_call.1} parent=11 // pred_check_branch
          %245 = sbr.rel (%p243) target = $region36
        $region35: #{tpu_custom_call.1} parent=11 // pred_region
          _
        $region36: #{tpu_custom_call.1} parent=11 // pred_fallthru
          _
      $region12: #{tpu_custom_call.1} parent=5 // pred_fallthru
        _
      %p246 = scmp.lt.s32.totalorder %s15, 3
      // Predicated region
      $region37: #{tpu_custom_call.1} parent=5 // pred_check
        %p247 = pneg %p246
      $region38: #{tpu_custom_call.1} parent=5 // pred_check_branch
        %249 = sbr.rel (%p247) target = $region40
      $region39: #{tpu_custom_call.1} parent=5 // pred_region
        // Predicated region
        $region41: #{tpu_custom_call.1} parent=39 // pred_check
          %p250 = pneg %p35
        $region42: #{tpu_custom_call.1} parent=39 // pred_check_branch
          %252 = sbr.rel (%p250) target = $region44
        $region43: #{tpu_custom_call.1} parent=39 // pred_region
          %p253 = scmp.lt.s32.totalorder %s15, 2
          %s254 = scalar_select %p253, %s15, 2
          %s255 = smul.addr %s254, 8
          %s256 = scalar_lea.vmem %s0, %s255
        $region44: #{tpu_custom_call.1} parent=39 // pred_fallthru
          _
      $region40: #{tpu_custom_call.1} parent=5 // pred_fallthru
        _
      %p257 = scmp.le.s32.totalorder 1, %s15
      %p258 = scmp.lt.s32.totalorder %s15, 4
      %p259 = pnand %p257, %p258
      %p260 = pneg %p259
      // Predicated region
      $region45: #{tpu_custom_call.1} parent=5 // pred_check
        _
      $region46: #{tpu_custom_call.1} parent=5 // pred_check_branch
        %262 = sbr.rel (%p259) target = $region48
      $region47: #{tpu_custom_call.1} parent=5 // pred_region
        %s263 = ssub.s32 %s15, 1
        // Predicated region
        $region49: #{tpu_custom_call.1} parent=47 // pred_check
          %p264 = pneg %p104
        $region50: #{tpu_custom_call.1} parent=47 // pred_check_branch
          %266 = sbr.rel (%p264) target = $region52
        $region51: #{tpu_custom_call.1} parent=47 // pred_region
          %267 = dma.done [#allocation3], 1024
        $region52: #{tpu_custom_call.1} parent=47 // pred_fallthru
          _
        // Predicated region
        $region53: #{tpu_custom_call.1} parent=47 // pred_check
          %p268 = pneg %p146
        $region54: #{tpu_custom_call.1} parent=47 // pred_check_branch
          %270 = sbr.rel (%p268) target = $region56
        $region55: #{tpu_custom_call.1} parent=47 // pred_region
          %271 = dma.done [#allocation5], 1024
        $region56: #{tpu_custom_call.1} parent=47 // pred_fallthru
          _
        %p272 = scmp.lt.s32.totalorder %s20, 2
        %s273 = scalar_select %p272, %s20, 2
        %s274 = smul.addr %s273, 8
        %s275 = scalar_lea.vmem %s0, %s274
        %p276 = pneg %p41
        %p277 = pneg %p38
        %p278 = pneg %p62
        %p279 = pneg %p59
        %p280 = pneg %p83
        %p281 = pneg %p80
        %p282 = pneg %p104
        %p283 = pneg %p101
        %p284 = pneg %p125
        %p285 = pneg %p122
        %p286 = pneg %p146
        %p287 = pneg %p143
        %p288 = pneg %p167
        %p289 = pneg %p164
        %p290 = pneg %p193
        %p291 = pneg %p190
        %p292 = scmp.lt.s32.totalorder %s20, 2
        %s293 = scalar_select %p292, %s20, 2
        %s294 = smul.addr %s293, 8
        %s295 = scalar_lea.vmem %s7, %s294
        %p296 = scmp.lt.s32.totalorder %s20, 2
        %s297 = scalar_select %p296, %s20, 2
        %s298 = smul.addr %s297, 8
        %s299 = scalar_lea.vmem %s0, %s298
        %p300 = scmp.lt.s32.totalorder %s20, 2
        %s301 = scalar_select %p300, %s20, 2
        %s302 = smul.addr %s301, 8
        %s303 = scalar_lea.vmem %s7, %s302
        %v305 = vld [vmem:[%s299] sm:$0xff]
        %v306 = vpack.c.bf16 %v305, %v305
        %v307 = vld [vmem:[%s1] sm:$0xf]
        %v308 = vld [vmem:[%s1 + $0x4] sm:$0xf]
        %v309 = vld [vmem:[%s2] sm:$0x1]
        %v311 = vlaneseq
        %v312 = vshrl.u32 %v311, 7
        %v313 = vsub.s32 0, %v312
        %v314 = vrot.slane %v309, %v313
        %v318 = vunpack.c.l.b16 %v307
        %v319 = vunpack.c.l.b16 %v308
        %v320 = vpack.c.b16 %v319, %v318
        %vm322 = vcmask 130048
        %v324 = vsel %vm322, %v306, 0
        %326 = vmatprep.subr.bf16.mxu0 0
        %327 = vmatpush1.bf16.msra.mxu0 0
        %328 = vmatprep.subr.bf16.mxu0 0
        %329 = vmatpush1.bf16.msra.mxu0 0
        %330 = vmatprep.subr.bf16.mxu0 0
        %331 = vmatpush1.bf16.msra.mxu0 0
        %332 = vmatprep.subr.bf16.mxu0 0
        %333 = vmatpush1.bf16.msra.mxu0 0
        %334 = vmatprep.subr.bf16.mxu0 0
        %335 = vmatpush1.bf16.msra.mxu0 0
        %336 = vmatprep.subr.bf16.mxu0 0
        %337 = vmatpush1.bf16.msra.mxu0 0
        %338 = vmatprep.subr.bf16.mxu0 0
        %339 = vmatpush1.bf16.msra.mxu0 0
        %340 = vmatprep.subr.bf16.mxu0 0
        %341 = vmatpush1.bf16.msra.mxu0 %v320
        %342 = vmatprep.subr.bf16.mxu0 0
        %343 = vmatpush2.bf16.msra.mxu0 0
        %344 = vmatprep.subr.bf16.mxu0 0
        %345 = vmatpush2.bf16.msra.mxu0 0
        %346 = vmatprep.subr.bf16.mxu0 0
        %347 = vmatpush2.bf16.msra.mxu0 0
        %348 = vmatprep.subr.bf16.mxu0 0
        %349 = vmatpush2.bf16.msra.mxu0 0
        %350 = vmatprep.subr.bf16.mxu0 0
        %351 = vmatpush2.bf16.msra.mxu0 0
        %352 = vmatprep.subr.bf16.mxu0 0
        %353 = vmatpush2.bf16.msra.mxu0 0
        %354 = vmatprep.subr.bf16.mxu0 0
        %355 = vmatpush2.bf16.msra.mxu0 0
        %356 = vmatprep.subr.bf16.mxu0 0
        %357 = vmatpush2.bf16.msra.mxu0 0
        %358 = vmatprep.mubr.bf16.mxu0 0
        %359 = vmatmul.mubr.bf16.gmra.mxu0 %v324
        %v360 = vpop.f32.mrf.mxu0
        %v361 = vadd.f32 %v314, %v360
        %v362 = vpop.f32.mrf.mxu0
        %v363 = vpop.f32.mrf.mxu0
        %v364 = vpop.f32.mrf.mxu0
        %365 = vdwg.mxu0
        %v366 = vmax.f32 %v361, 0.0
        %v367 = vpack.c.bf16 %v366, %v366
        %v368 = vld [vmem:[#allocation2] sm:$0xf]
        %v369 = vld [vmem:[#allocation2 + $0x4] sm:$0xf]
        %v370 = vld [vmem:[#allocation2 + $0x8] sm:$0xf]
        %v371 = vld [vmem:[#allocation2 + $0xc] sm:$0xf]
        %v372 = vld [vmem:[#allocation2 + $0x10] sm:$0xf]
        %v373 = vld [vmem:[#allocation2 + $0x14] sm:$0xf]
        %v374 = vld [vmem:[#allocation2 + $0x18] sm:$0xf]
        %v375 = vld [vmem:[#allocation2 + $0x1c] sm:$0xf]
        %v376 = vld [vmem:[#allocation2 + $0x20] sm:$0xf]
        %v377 = vld [vmem:[#allocation2 + $0x24] sm:$0xf]
        %v378 = vld [vmem:[#allocation2 + $0x28] sm:$0xf]
        %v379 = vld [vmem:[#allocation2 + $0x2c] sm:$0xf]
        %v380 = vld [vmem:[#allocation2 + $0x30] sm:$0xf]
        %v381 = vld [vmem:[#allocation2 + $0x34] sm:$0xf]
        %v382 = vld [vmem:[#allocation2 + $0x38] sm:$0xf]
        %v383 = vld [vmem:[#allocation2 + $0x3c] sm:$0xf]
        %v384 = vld [vmem:[%s4] sm:$0x1]
        %v386 = vlaneseq
        %v387 = vshrl.u32 %v386, 7
        %v388 = vsub.s32 0, %v387
        %v389 = vrot.slane %v384, %v388
        %v407 = vunpack.c.l.b16 %v368
        %v408 = vunpack.c.l.b16 %v369
        %v409 = vunpack.c.l.b16 %v370
        %v410 = vunpack.c.l.b16 %v371
        %v411 = vunpack.c.l.b16 %v372
        %v412 = vunpack.c.l.b16 %v373
        %v413 = vunpack.c.l.b16 %v374
        %v414 = vunpack.c.l.b16 %v375
        %v415 = vunpack.c.l.b16 %v376
        %v416 = vunpack.c.l.b16 %v377
        %v417 = vunpack.c.l.b16 %v378
        %v418 = vunpack.c.l.b16 %v379
        %v419 = vunpack.c.l.b16 %v380
        %v420 = vunpack.c.l.b16 %v381
        %v421 = vunpack.c.l.b16 %v382
        %v422 = vunpack.c.l.b16 %v383
        %v423 = vpack.c.b16 %v408, %v407
        %v424 = vpack.c.b16 %v410, %v409
        %v425 = vpack.c.b16 %v412, %v411
        %v426 = vpack.c.b16 %v414, %v413
        %v427 = vpack.c.b16 %v416, %v415
        %v428 = vpack.c.b16 %v418, %v417
        %v429 = vpack.c.b16 %v420, %v419
        %v430 = vpack.c.b16 %v422, %v421
        %439 = vmatprep.subr.bf16.mxu0 0
        %440 = vmatpush1.bf16.msra.mxu0 %v430
        %441 = vmatprep.subr.bf16.mxu0 0
        %442 = vmatpush1.bf16.msra.mxu0 %v429
        %443 = vmatprep.subr.bf16.mxu0 0
        %444 = vmatpush1.bf16.msra.mxu0 %v428
        %445 = vmatprep.subr.bf16.mxu0 0
        %446 = vmatpush1.bf16.msra.mxu0 %v427
        %447 = vmatprep.subr.bf16.mxu0 0
        %448 = vmatpush1.bf16.msra.mxu0 %v426
        %449 = vmatprep.subr.bf16.mxu0 0
        %450 = vmatpush1.bf16.msra.mxu0 %v425
        %451 = vmatprep.subr.bf16.mxu0 0
        %452 = vmatpush1.bf16.msra.mxu0 %v424
        %453 = vmatprep.subr.bf16.mxu0 0
        %454 = vmatpush1.bf16.msra.mxu0 %v423
        %455 = vmatprep.subr.bf16.mxu0 0
        %456 = vmatpush2.bf16.msra.mxu0 0
        %457 = vmatprep.subr.bf16.mxu0 0
        %458 = vmatpush2.bf16.msra.mxu0 0
        %459 = vmatprep.subr.bf16.mxu0 0
        %460 = vmatpush2.bf16.msra.mxu0 0
        %461 = vmatprep.subr.bf16.mxu0 0
        %462 = vmatpush2.bf16.msra.mxu0 0
        %463 = vmatprep.subr.bf16.mxu0 0
        %464 = vmatpush2.bf16.msra.mxu0 0
        %465 = vmatprep.subr.bf16.mxu0 0
        %466 = vmatpush2.bf16.msra.mxu0 0
        %467 = vmatprep.subr.bf16.mxu0 0
        %468 = vmatpush2.bf16.msra.mxu0 0
        %469 = vmatprep.subr.bf16.mxu0 0
        %470 = vmatpush2.bf16.msra.mxu0 0
        %471 = vmatprep.mubr.bf16.mxu0 0
        %472 = vmatmul.mubr.bf16.gmra.mxu0 %v367
        %v473 = vpop.f32.mrf.mxu0
        %v474 = vadd.f32 %v389, %v473
        %v475 = vpop.f32.mrf.mxu0
        %v476 = vpop.f32.mrf.mxu0
        %v477 = vpop.f32.mrf.mxu0
        %478 = vdwg.mxu0
        %v479 = vmax.f32 %v474, 0.0
        %v480 = vpack.c.bf16 %v479, %v479
        %v481 = vld [vmem:[#allocation4] sm:$0xf]
        %v482 = vld [vmem:[#allocation4 + $0x4] sm:$0xf]
        %v483 = vld [vmem:[#allocation4 + $0x8] sm:$0xf]
        %v484 = vld [vmem:[#allocation4 + $0xc] sm:$0xf]
        %v485 = vld [vmem:[#allocation4 + $0x10] sm:$0xf]
        %v486 = vld [vmem:[#allocation4 + $0x14] sm:$0xf]
        %v487 = vld [vmem:[#allocation4 + $0x18] sm:$0xf]
        %v488 = vld [vmem:[#allocation4 + $0x1c] sm:$0xf]
        %v489 = vld [vmem:[#allocation4 + $0x20] sm:$0xf]
        %v490 = vld [vmem:[#allocation4 + $0x24] sm:$0xf]
        %v491 = vld [vmem:[#allocation4 + $0x28] sm:$0xf]
        %v492 = vld [vmem:[#allocation4 + $0x2c] sm:$0xf]
        %v493 = vld [vmem:[#allocation4 + $0x30] sm:$0xf]
        %v494 = vld [vmem:[#allocation4 + $0x34] sm:$0xf]
        %v495 = vld [vmem:[#allocation4 + $0x38] sm:$0xf]
        %v496 = vld [vmem:[#allocation4 + $0x3c] sm:$0xf]
        %v497 = vld [vmem:[%s6] sm:$0x1]
        %v499 = vlaneseq
        %v500 = vshrl.u32 %v499, 7
        %v501 = vsub.s32 0, %v500
        %v502 = vrot.slane %v497, %v501
        %v520 = vunpack.c.l.b16 %v481
        %v521 = vunpack.c.l.b16 %v482
        %v522 = vunpack.c.l.b16 %v483
        %v523 = vunpack.c.l.b16 %v484
        %v524 = vunpack.c.l.b16 %v485
        %v525 = vunpack.c.l.b16 %v486
        %v526 = vunpack.c.l.b16 %v487
        %v527 = vunpack.c.l.b16 %v488
        %v528 = vunpack.c.l.b16 %v489
        %v529 = vunpack.c.l.b16 %v490
        %v530 = vunpack.c.l.b16 %v491
        %v531 = vunpack.c.l.b16 %v492
        %v532 = vunpack.c.l.b16 %v493
        %v533 = vunpack.c.l.b16 %v494
        %v534 = vunpack.c.l.b16 %v495
        %v535 = vunpack.c.l.b16 %v496
        %v536 = vpack.c.b16 %v521, %v520
        %v537 = vpack.c.b16 %v523, %v522
        %v538 = vpack.c.b16 %v525, %v524
        %v539 = vpack.c.b16 %v527, %v526
        %v540 = vpack.c.b16 %v529, %v528
        %v541 = vpack.c.b16 %v531, %v530
        %v542 = vpack.c.b16 %v533, %v532
        %v543 = vpack.c.b16 %v535, %v534
        %552 = vmatprep.subr.bf16.mxu0 0
        %553 = vmatpush1.bf16.msra.mxu0 %v543
        %554 = vmatprep.subr.bf16.mxu0 0
        %555 = vmatpush1.bf16.msra.mxu0 %v542
        %556 = vmatprep.subr.bf16.mxu0 0
        %557 = vmatpush1.bf16.msra.mxu0 %v541
        %558 = vmatprep.subr.bf16.mxu0 0
        %559 = vmatpush1.bf16.msra.mxu0 %v540
        %560 = vmatprep.subr.bf16.mxu0 0
        %561 = vmatpush1.bf16.msra.mxu0 %v539
        %562 = vmatprep.subr.bf16.mxu0 0
        %563 = vmatpush1.bf16.msra.mxu0 %v538
        %564 = vmatprep.subr.bf16.mxu0 0
        %565 = vmatpush1.bf16.msra.mxu0 %v537
        %566 = vmatprep.subr.bf16.mxu0 0
        %567 = vmatpush1.bf16.msra.mxu0 %v536
        %568 = vmatprep.subr.bf16.mxu0 0
        %569 = vmatpush2.bf16.msra.mxu0 0
        %570 = vmatprep.subr.bf16.mxu0 0
        %571 = vmatpush2.bf16.msra.mxu0 0
        %572 = vmatprep.subr.bf16.mxu0 0
        %573 = vmatpush2.bf16.msra.mxu0 0
        %574 = vmatprep.subr.bf16.mxu0 0
        %575 = vmatpush2.bf16.msra.mxu0 0
        %576 = vmatprep.subr.bf16.mxu0 0
        %577 = vmatpush2.bf16.msra.mxu0 0
        %578 = vmatprep.subr.bf16.mxu0 0
        %579 = vmatpush2.bf16.msra.mxu0 0
        %580 = vmatprep.subr.bf16.mxu0 0
        %581 = vmatpush2.bf16.msra.mxu0 0
        %582 = vmatprep.subr.bf16.mxu0 0
        %583 = vmatpush2.bf16.msra.mxu0 0
        %584 = vmatprep.mubr.bf16.mxu0 0
        %585 = vmatmul.mubr.bf16.gmra.mxu0 %v480
        %v586 = vpop.f32.mrf.mxu0
        %v587 = vadd.f32 %v502, %v586
        %v588 = vpop.f32.mrf.mxu0
        %v589 = vpop.f32.mrf.mxu0
        %v590 = vpop.f32.mrf.mxu0
        %591 = vdwg.mxu0
        %v592 = vxor.u32 %v587, 2147483648
        %v593 = vmul.f32 %v592, 1.442695
        %v594 = vpow.pop %v593
        %v595 = vadd.f32 %v594, 1.0
        %v596 = vrcp.pop %v595
        %v597 = vmul.f32 1.0, %v596
        %vm598 = vcmask 31744
        %599 = vst.msk [vmem:[%s303] sm:$0xff] %vm598, %v597
        %p600 = scmp.lt.s32.totalorder %s20, 2
        %s601 = scalar_select %p600, %s20, 2
        %s602 = smul.addr %s601, 8
        %s603 = scalar_lea.vmem %s7, %s602
        // Predicated region
        $region57: #{tpu_custom_call.1} parent=47 // pred_check
          %p604 = pneg %p190
        $region58: #{tpu_custom_call.1} parent=47 // pred_check_branch
          %606 = sbr.rel (%p604) target = $region60
        $region59: #{tpu_custom_call.1} parent=47 // pred_region
          _
        $region60: #{tpu_custom_call.1} parent=47 // pred_fallthru
          _
      $region48: #{tpu_custom_call.1} parent=5 // pred_fallthru
        _
      %p607 = scmp.le.s32.totalorder 2, %s15
      // Predicated region
      $region61: #{tpu_custom_call.1} parent=5 // pred_check
        %p608 = pneg %p607
      $region62: #{tpu_custom_call.1} parent=5 // pred_check_branch
        %610 = sbr.rel (%p608) target = $region64
      $region63: #{tpu_custom_call.1} parent=5 // pred_region
        %s611 = ssub.s32 %s15, 2
        // Predicated region
        $region65: #{tpu_custom_call.1} parent=63 // pred_check
          %p612 = pneg %p196
        $region66: #{tpu_custom_call.1} parent=63 // pred_check_branch
          %614 = sbr.rel (%p612) target = $region68
        $region67: #{tpu_custom_call.1} parent=63 // pred_region
          %p615 = scmp.lt.s32.totalorder %s21, 2
          %s616 = scalar_select %p615, %s21, 2
          %s617 = smul.addr %s616, 8
          %s618 = scalar_lea.vmem %s7, %s617
        $region68: #{tpu_custom_call.1} parent=63 // pred_fallthru
          _
      $region64: #{tpu_custom_call.1} parent=5 // pred_fallthru
        _
    $region6: #{tpu_custom_call.1} parent=1 // loop_footer
      %s19 = sadd.s32 1, %s15
    $region7: #{tpu_custom_call.1} parent=1 // loop_footer_branch
      %14 = sbr.rel target = $region3
    $region8: #{tpu_custom_call.1} parent=1 // loop_exit
      _
    %619 = vsyncpa [#allocation3], 1
    %s620 = scalar_lea.sflag [#allocation3], 1
    %621 = vsyncpa %s620, 1
    %622 = vsyncpa [#allocation5], 1

</llo_original>
